<compile_context>
chip_gen: v6e
topology: v6e:2x2x1
jax: 0.10.0
libtpu: 0.0.40
codegen_flags: <defaults>
</compile_context>

<pallas_src>
import jax
import jax.numpy as jnp
from jax.experimental import pallas as pl
from jax.experimental.pallas import tpu as pltpu

LATENT_DIM = 5
HIDDEN = 64
OUTPUT_DIM = 11

K_PAD = 8             # latent zero-padded to 8 sublanes so fc1 uses the MXU
LANE = 128            # hidden padded to a full 128-lane width (VMEM only)
B1_ROW = K_PAD        # row of b1 inside the packed param slab
B2_ROW = K_PAD + 1    # row of b2
W2_ROW = 2 * K_PAD    # first row of W2 (8-aligned -> tile-aligned slice)
PACK_ROWS = W2_ROW + LANE   # 144 rows total


def decoder_kernel(z_ref, p_ref, out_ref):
    """One batch tile: out = relu(z @ W1 + b1) @ W2 + b2, slim 11-lane store."""
    z = z_ref[...]                                # (TB, 8)   zero-padded latent
    w1 = p_ref[0:K_PAD, :]                        # (8, 128)  zero-padded
    b1 = p_ref[B1_ROW:B1_ROW + 1, :]              # (1, 128)
    b2 = p_ref[B2_ROW:B2_ROW + 1, :]              # (1, 128)
    w2 = p_ref[W2_ROW:W2_ROW + LANE, :]           # (128, 128) zero-padded

    # fc1 on the MXU (K padded 5->8); padded lanes remain exact zeros.
    h = jnp.maximum(
        jnp.dot(z, w1, preferred_element_type=jnp.float32) + b1, 0.0)
    # fc2 on the MXU; store only the real output lanes (masked vst is far
    # cheaper than 128-lane HBM writeback plus a second slicing pass).
    y = jnp.dot(h, w2, preferred_element_type=jnp.float32) + b2
    out_ref[...] = y[:, :out_ref.shape[-1]]


def decoder_forward(z, w1, b1, w2, b2, *, tb=2048, min_tiles=2):
    """z: (B, latent), w1: (latent, hidden), b1: (hidden,)/(1,hidden),
    w2: (hidden, out_dim), b2: (out_dim,)/(1,out_dim) -> (B, out_dim) f32."""
    B, latent = z.shape
    hidden, out_dim = w2.shape
    assert latent <= K_PAD and hidden <= LANE and out_dim <= LANE

    # ---- pack all params into one zero-padded (144, 128) slab -------------
    packed = jnp.zeros((PACK_ROWS, LANE), jnp.float32)
    packed = packed.at[:latent, :hidden].set(w1.astype(jnp.float32))
    packed = packed.at[B1_ROW, :hidden].set(b1.reshape(-1).astype(jnp.float32))
    packed = packed.at[B2_ROW, :out_dim].set(b2.reshape(-1).astype(jnp.float32))
    packed = packed.at[W2_ROW:W2_ROW + hidden, :out_dim].set(
        w2.astype(jnp.float32))

    # ---- batch tiling: balanced tiles, >=2 (even) grid steps for v7x ------
    num_tiles = max(min_tiles, pl.cdiv(B, tb))
    num_tiles += num_tiles % 2                 # even count -> balanced cores
    tb_eff = max(8, pl.cdiv(pl.cdiv(B, num_tiles), 8) * 8)
    num_tiles = pl.cdiv(B, tb_eff)
    b_pad = num_tiles * tb_eff

    # latent padded 5->8 (MXU-friendly), batch padded to b_pad rows.
    z_p = jnp.zeros((b_pad, K_PAD), jnp.float32)
    z_p = z_p.at[:B, :latent].set(z.astype(jnp.float32))

    out = pl.pallas_call(
        decoder_kernel,
        out_shape=jax.ShapeDtypeStruct((b_pad, out_dim), jnp.float32),
        grid=(num_tiles,),
        in_specs=[
            pl.BlockSpec((tb_eff, K_PAD), lambda i: (i, 0)),    # z tile
            pl.BlockSpec((PACK_ROWS, LANE), lambda i: (0, 0)),  # packed params
        ],
        out_specs=pl.BlockSpec((tb_eff, out_dim), lambda i: (i, 0)),
        compiler_params=pltpu.CompilerParams(
            dimension_semantics=("parallel",),
        ),
    )(z_p, packed)

    # Strip only the batch padding; output lanes are already slim (out_dim).
    return out[:B]


def init_decoder_params(key, latent_dim=LATENT_DIM, hidden=HIDDEN,
                        output_dim=OUTPUT_DIM):
    """Deterministic init mimicking PyTorch nn.Linear defaults
    (uniform in +/- 1/sqrt(fan_in)); weights stored as (in, out)."""
    k1, k2, k3, k4 = jax.random.split(key, 4)
    bound1 = 1.0 / (latent_dim ** 0.5)
    bound2 = 1.0 / (hidden ** 0.5)
    w1 = jax.random.uniform(k1, (latent_dim, hidden), jnp.float32, -bound1, bound1)
    b1 = jax.random.uniform(k2, (1, hidden), jnp.float32, -bound1, bound1)
    w2 = jax.random.uniform(k3, (hidden, output_dim), jnp.float32, -bound2, bound2)
    b2 = jax.random.uniform(k4, (1, output_dim), jnp.float32, -bound2, bound2)
    return w1, b1, w2, b2


def decoder_ref(z, w1, b1, w2, b2):
    h = jnp.maximum(z @ w1 + b1, 0.0)
    return h @ w2 + b2


if __name__ == "__main__":
    key = jax.random.PRNGKey(0)
    k_params, k_z1, k_z2 = jax.random.split(key, 3)

    w1, b1, w2, b2 = init_decoder_params(k_params)

    # Small test (minimum tile size).
    z_small = jax.random.normal(k_z1, (8, LATENT_DIM), jnp.float32)
    out_small = jax.block_until_ready(decoder_forward(z_small, w1, b1, w2, b2))
    ref_small = decoder_ref(z_small, w1, b1, w2, b2)
    assert out_small.shape == (8, OUTPUT_DIM)
    assert jnp.allclose(out_small, ref_small, atol=1e-5, rtol=1e-5)

    # Ragged batch (exercises 2 balanced tiles + batch-padding strip).
    z_odd = jax.random.normal(k_z2, (37, LATENT_DIM), jnp.float32)
    out_odd = jax.block_until_ready(decoder_forward(z_odd, w1, b1, w2, b2))
    ref_odd = decoder_ref(z_odd, w1, b1, w2, b2)
    assert out_odd.shape == (37, OUTPUT_DIM)
    assert jnp.allclose(out_odd, ref_odd, atol=1e-5, rtol=1e-5)

    print("KERNEL_OK")
</pallas_src>

<mosaic_0001>
module attributes {stable_mosaic.version = 11 : i64} {
  func.func @decoder_kernel(%arg0: i32, %arg1: memref<8x8xf32, #tpu.memory_space<vmem>>, %arg2: memref<144x128xf32, #tpu.memory_space<vmem>>, %arg3: memref<8x11xf32, #tpu.memory_space<vmem>>) attributes {dimension_semantics = [#tpu.dimension_semantics<parallel>], iteration_bounds = array<i64: 1>, scalar_prefetch = 0 : i64, scratch_operands = 0 : i64, tpu.core_type = #tpu.core_type<tc>, window_params = [{transform_indices = @transform_0, window_bounds = array<i64: 8, 8>}, {pipeline_mode = #tpu.pipeline_mode<synchronous>, transform_indices = @transform_1, window_bounds = array<i64: 144, 128>}, {transform_indices = @transform_2, window_bounds = array<i64: 8, 11>}]} {
    %c0 = arith.constant 0 : index
    %c0_0 = arith.constant 0 : index
    %0 = vector.load %arg1[%c0, %c0_0] : memref<8x8xf32, #tpu.memory_space<vmem>>, vector<8x8xf32>
    %c0_1 = arith.constant 0 : index
    %c0_2 = arith.constant 0 : index
    %1 = vector.load %arg2[%c0_1, %c0_2] : memref<144x128xf32, #tpu.memory_space<vmem>>, vector<8x128xf32>
    %c8 = arith.constant 8 : index
    %c0_3 = arith.constant 0 : index
    %2 = vector.load %arg2[%c8, %c0_3] : memref<144x128xf32, #tpu.memory_space<vmem>>, vector<1x128xf32>
    %c9 = arith.constant 9 : index
    %c0_4 = arith.constant 0 : index
    %3 = vector.load %arg2[%c9, %c0_4] : memref<144x128xf32, #tpu.memory_space<vmem>>, vector<1x128xf32>
    %c16 = arith.constant 16 : index
    %c0_5 = arith.constant 0 : index
    %4 = vector.load %arg2[%c16, %c0_5] : memref<144x128xf32, #tpu.memory_space<vmem>>, vector<128x128xf32>
    %cst = arith.constant dense<0.000000e+00> : vector<8x128xf32>
    %5 = tpu.matmul %0, %1, %cst {dimension_numbers = #tpu.dot_dimension_numbers<[1], [0], [0], [1], [0, 0, 1, 1], [], []>} : vector<8x8xf32>, vector<8x128xf32>, vector<8x128xf32> -> vector<8x128xf32>
    %6 = vector.broadcast %2 : vector<1x128xf32> to vector<8x128xf32>
    %7 = arith.addf %5, %6 : vector<8x128xf32>
    %cst_6 = arith.constant 0.000000e+00 : f32
    %8 = vector.broadcast %cst_6 : f32 to vector<8x128xf32>
    %9 = arith.maximumf %7, %8 : vector<8x128xf32>
    %cst_7 = arith.constant dense<0.000000e+00> : vector<8x128xf32>
    %10 = tpu.matmul %9, %4, %cst_7 {dimension_numbers = #tpu.dot_dimension_numbers<[1], [0], [0], [1], [0, 0, 1, 1], [], []>} : vector<8x128xf32>, vector<128x128xf32>, vector<8x128xf32> -> vector<8x128xf32>
    %11 = vector.broadcast %3 : vector<1x128xf32> to vector<8x128xf32>
    %12 = arith.addf %10, %11 : vector<8x128xf32>
    %13 = vector.extract_strided_slice %12 {offsets = [0, 0], sizes = [8, 11], strides = [1, 1]} : vector<8x128xf32> to vector<8x11xf32>
    %c0_8 = arith.constant 0 : index
    %c0_9 = arith.constant 0 : index
    %14 = vector.load %arg3[%c0_8, %c0_9] : memref<8x11xf32, #tpu.memory_space<vmem>>, vector<8x11xf32>
    tpu.vector_store %arg3[%c0_8, %c0_9], %13 {strides = array<i32>} : memref<8x11xf32, #tpu.memory_space<vmem>>, vector<8x11xf32>,
    return
  }
  func.func @transform_0(%arg0: i32) -> (i32, i32) {
    %c0_i32 = arith.constant 0 : i32
    %c0_i32_0 = arith.constant 0 : i32
    return %arg0, %c0_i32 : i32, i32
  }
  func.func @transform_1(%arg0: i32) -> (i32, i32) {
    %c0_i32 = arith.constant 0 : i32
    %c0_i32_0 = arith.constant 0 : i32
    %c0_i32_1 = arith.constant 0 : i32
    return %c0_i32, %c0_i32_0 : i32, i32
  }
  func.func @transform_2(%arg0: i32) -> (i32, i32) {
    %c0_i32 = arith.constant 0 : i32
    %c0_i32_0 = arith.constant 0 : i32
    return %arg0, %c0_i32 : i32, i32
  }
}

</mosaic_0001>

<llo_original>
// kernel: tpu_custom_call.1
$region0: #{tpu_custom_call.1}
  #allocation0 [shape = 'u32[]', space=smem, size = 0x4, offset = 0x4, fixed_abs, tag = 'smem constant byte address 0x4 - core index']
  #allocation1 [shape = 'u32[144,128]{1,0:T(1,128)}', space=vmem, size = 0x12000, scoped, tag = 'internal scratch']
  %s0 = inlined_call_operand.hbm [shape: f32[8,8], index: 0, kind: input, shape index: {}]
  %s1 = inlined_call_operand.hbm [shape: f32[144,128], index: 1, kind: input, shape index: {}]
  %s2 = inlined_call_operand.hbm [shape: f32[8,11], index: 2, kind: output, shape index: {}]
  %s3 = sld [smem:[#allocation0]]
  $region26: #{tpu_custom_call.1} parent=0
    _
  %s5 = ssub.s32 1, %s3
  %s6 = scalar_select 0, %s5, %s3
  $region1: #{tpu_custom_call.1} parent=0
    #allocation2 [shape = 'u8[4096]{0}', space=vmem, size = 0x1000, scoped, tag = 'input window, operand 0, single buffered']
    #allocation3 [shape = 's32[1]{0}', space=sflag, size = 0x4, scoped, tag = 'scoped memory for tpu_custom_call.1']
    #allocation4 [shape = 's32[1]{0}', space=sflag, size = 0x4, scoped, tag = 'scoped memory for tpu_custom_call.1']
    #allocation5 [shape = 'u8[73728]{0}', space=vmem, size = 0x12000, scoped, tag = 'input window, operand 1, single buffered']
    #allocation6 [shape = 's32[1]{0}', space=sflag, size = 0x4, scoped, tag = 'scoped memory for tpu_custom_call.1']
    #allocation7 [shape = 'u8[4096]{0}', space=vmem, size = 0x1000, scoped, tag = 'output window, operand 0, single buffered']
    %7 = vsyncpa [#allocation3], 0
    %8 = vsyncpa [#allocation6], 0
    %9 = vsyncpa [#allocation4], 0
    // Predicated region
    $region2: #{tpu_custom_call.1} parent=1 // pred_check
      _
    $region3: #{tpu_custom_call.1} parent=1 // pred_check_branch
      %11 = sbr.rel (0) target = $region5
    $region4: #{tpu_custom_call.1} parent=1 // pred_region
      %s13 = ssub.s32 128, 128
      %14 = vsyncadd [#allocation3], %s13
      %s16 = sshll.u32 [#allocation2], 4
      %s17 = int_to_ptr.vmem [resolvable:$true] %s16
      %19 = dma.hbm_to_vmem [thread:$0]  %s0, 128, %s17, [#allocation3]
    $region5: #{tpu_custom_call.1} parent=1 // pred_fallthru
      _
    // Predicated region
    $region6: #{tpu_custom_call.1} parent=1 // pred_check
      _
    $region7: #{tpu_custom_call.1} parent=1 // pred_check_branch
      %21 = sbr.rel (0) target = $region9
    $region8: #{tpu_custom_call.1} parent=1 // pred_region
      %s23 = ssub.s32 2304, 2304
      %24 = vsyncadd [#allocation6], %s23
      %s25 = sshll.u32 [#allocation5], 4
      %s26 = int_to_ptr.vmem [resolvable:$true] %s25
      %31 = dma.hbm_to_vmem [thread:$0]  %s1, 2304, %s26, [#allocation6], 128, 128, 8
    $region9: #{tpu_custom_call.1} parent=1 // pred_fallthru
      _
    // Predicated region
    $region10: #{tpu_custom_call.1} parent=1 // pred_check
      _
    $region11: #{tpu_custom_call.1} parent=1 // pred_check_branch
      %33 = sbr.rel (0) target = $region13
    $region12: #{tpu_custom_call.1} parent=1 // pred_region
      %34 = dma.done [#allocation3], 128
    $region13: #{tpu_custom_call.1} parent=1 // pred_fallthru
      _
    // Predicated region
    $region14: #{tpu_custom_call.1} parent=1 // pred_check
      _
    $region15: #{tpu_custom_call.1} parent=1 // pred_check_branch
      %36 = sbr.rel (0) target = $region17
    $region16: #{tpu_custom_call.1} parent=1 // pred_region
      %37 = dma.done [#allocation6], 2304
    $region17: #{tpu_custom_call.1} parent=1 // pred_fallthru
      _
    %v38 = vld [vmem:[#allocation2] sm:$0xff]
    %v39 = vld [vmem:[#allocation5] sm:$0xff]
    %v40 = vld [vmem:[#allocation5 + $0x8] sm:$0x1]
    %v41 = vld [vmem:[#allocation5 + $0x9] sm:$0x1]
    %v42 = vld [vmem:[#allocation5 + $0x10] sm:$0xff]
    %v43 = vld [vmem:[#allocation5 + $0x18] sm:$0xff]
    %v44 = vld [vmem:[#allocation5 + $0x20] sm:$0xff]
    %v45 = vld [vmem:[#allocation5 + $0x28] sm:$0xff]
    %v46 = vld [vmem:[#allocation5 + $0x30] sm:$0xff]
    %v47 = vld [vmem:[#allocation5 + $0x38] sm:$0xff]
    %v48 = vld [vmem:[#allocation5 + $0x40] sm:$0xff]
    %v49 = vld [vmem:[#allocation5 + $0x48] sm:$0xff]
    %v50 = vld [vmem:[#allocation5 + $0x50] sm:$0xff]
    %v51 = vld [vmem:[#allocation5 + $0x58] sm:$0xff]
    %v52 = vld [vmem:[#allocation5 + $0x60] sm:$0xff]
    %v53 = vld [vmem:[#allocation5 + $0x68] sm:$0xff]
    %v54 = vld [vmem:[#allocation5 + $0x70] sm:$0xff]
    %v55 = vld [vmem:[#allocation5 + $0x78] sm:$0xff]
    %v56 = vld [vmem:[#allocation5 + $0x80] sm:$0xff]
    %v57 = vld [vmem:[#allocation5 + $0x88] sm:$0xff]
    %v58 = vlaneseq
    %v59 = vshrl.u32 %v58, 7
    %v60 = vsub.s32 0, %v59
    %v61 = vrot.slane %v40, %v60
    %vm62 = vcmask 64512
    %v64 = vsel %vm62, %v38, 0
    %66 = vmatprep.subr.mxu0 0.0
    %67 = vmatpush1.msra.mxu0 0.0
    %68 = vmatprep.subr.mxu0 0.0
    %69 = vmatpush1.msra.mxu0 0.0
    %70 = vmatprep.subr.mxu0 0.0
    %71 = vmatpush1.msra.mxu0 0.0
    %72 = vmatprep.subr.mxu0 0.0
    %73 = vmatpush1.msra.mxu0 0.0
    %74 = vmatprep.subr.mxu0 0.0
    %75 = vmatpush1.msra.mxu0 0.0
    %76 = vmatprep.subr.mxu0 0.0
    %77 = vmatpush1.msra.mxu0 0.0
    %78 = vmatprep.subr.mxu0 0.0
    %79 = vmatpush1.msra.mxu0 0.0
    %80 = vmatprep.subr.mxu0 0.0
    %81 = vmatpush1.msra.mxu0 0.0
    %82 = vmatprep.subr.mxu0 0.0
    %83 = vmatpush1.msra.mxu0 0.0
    %84 = vmatprep.subr.mxu0 0.0
    %85 = vmatpush1.msra.mxu0 0.0
    %86 = vmatprep.subr.mxu0 0.0
    %87 = vmatpush1.msra.mxu0 0.0
    %88 = vmatprep.subr.mxu0 0.0
    %89 = vmatpush1.msra.mxu0 0.0
    %90 = vmatprep.subr.mxu0 0.0
    %91 = vmatpush1.msra.mxu0 0.0
    %92 = vmatprep.subr.mxu0 0.0
    %93 = vmatpush1.msra.mxu0 0.0
    %94 = vmatprep.subr.mxu0 0.0
    %95 = vmatpush1.msra.mxu0 0.0
    %96 = vmatprep.subr.mxu0 0.0
    %97 = vmatpush1.msra.mxu0 %v39
    %98 = vmatprep.subr.mxu0 0.0
    %99 = vmatpush2.msra.mxu0 0.0
    %100 = vmatprep.subr.mxu0 0.0
    %101 = vmatpush2.msra.mxu0 0.0
    %102 = vmatprep.subr.mxu0 0.0
    %103 = vmatpush2.msra.mxu0 0.0
    %104 = vmatprep.subr.mxu0 0.0
    %105 = vmatpush2.msra.mxu0 0.0
    %106 = vmatprep.subr.mxu0 0.0
    %107 = vmatpush2.msra.mxu0 0.0
    %108 = vmatprep.subr.mxu0 0.0
    %109 = vmatpush2.msra.mxu0 0.0
    %110 = vmatprep.subr.mxu0 0.0
    %111 = vmatpush2.msra.mxu0 0.0
    %112 = vmatprep.subr.mxu0 0.0
    %113 = vmatpush2.msra.mxu0 0.0
    %114 = vmatprep.subr.mxu0 0.0
    %115 = vmatpush2.msra.mxu0 0.0
    %116 = vmatprep.subr.mxu0 0.0
    %117 = vmatpush2.msra.mxu0 0.0
    %118 = vmatprep.subr.mxu0 0.0
    %119 = vmatpush2.msra.mxu0 0.0
    %120 = vmatprep.subr.mxu0 0.0
    %121 = vmatpush2.msra.mxu0 0.0
    %122 = vmatprep.subr.mxu0 0.0
    %123 = vmatpush2.msra.mxu0 0.0
    %124 = vmatprep.subr.mxu0 0.0
    %125 = vmatpush2.msra.mxu0 0.0
    %126 = vmatprep.subr.mxu0 0.0
    %127 = vmatpush2.msra.mxu0 0.0
    %128 = vmatprep.subr.mxu0 0.0
    %129 = vmatpush2.msra.mxu0 0.0
    %130 = vmatprep.mubr.f32.mxu0 0.0
    %131 = vmatmul.mubr.f32.gmra.mxu0 %v64
    %v132 = vpop.f32.mrf.mxu0
    %v133 = vadd.f32 %v61, %v132
    %v134 = vpop.f32.mrf.mxu0
    %135 = vdwg.mxu0
    %v136 = vmax.f32 %v133, 0.0
    %v137 = vlaneseq
    %v138 = vshrl.u32 %v137, 7
    %v139 = vsub.s32 0, %v138
    %v140 = vrot.slane %v41, %v139
    %141 = vmatprep.subr.mxu0 0.0
    %142 = vmatpush1.msra.mxu0 %v57
    %143 = vmatprep.subr.mxu0 0.0
    %144 = vmatpush1.msra.mxu0 %v56
    %145 = vmatprep.subr.mxu0 0.0
    %146 = vmatpush1.msra.mxu0 %v55
    %147 = vmatprep.subr.mxu0 0.0
    %148 = vmatpush1.msra.mxu0 %v54
    %149 = vmatprep.subr.mxu0 0.0
    %150 = vmatpush1.msra.mxu0 %v53
    %151 = vmatprep.subr.mxu0 0.0
    %152 = vmatpush1.msra.mxu0 %v52
    %153 = vmatprep.subr.mxu0 0.0
    %154 = vmatpush1.msra.mxu0 %v51
    %155 = vmatprep.subr.mxu0 0.0
    %156 = vmatpush1.msra.mxu0 %v50
    %157 = vmatprep.subr.mxu0 0.0
    %158 = vmatpush1.msra.mxu0 %v49
    %159 = vmatprep.subr.mxu0 0.0
    %160 = vmatpush1.msra.mxu0 %v48
    %161 = vmatprep.subr.mxu0 0.0
    %162 = vmatpush1.msra.mxu0 %v47
    %163 = vmatprep.subr.mxu0 0.0
    %164 = vmatpush1.msra.mxu0 %v46
    %165 = vmatprep.subr.mxu0 0.0
    %166 = vmatpush1.msra.mxu0 %v45
    %167 = vmatprep.subr.mxu0 0.0
    %168 = vmatpush1.msra.mxu0 %v44
    %169 = vmatprep.subr.mxu0 0.0
    %170 = vmatpush1.msra.mxu0 %v43
    %171 = vmatprep.subr.mxu0 0.0
    %172 = vmatpush1.msra.mxu0 %v42
    %173 = vmatprep.subr.mxu0 0.0
    %174 = vmatpush2.msra.mxu0 0.0
    %175 = vmatprep.subr.mxu0 0.0
    %176 = vmatpush2.msra.mxu0 0.0
    %177 = vmatprep.subr.mxu0 0.0
    %178 = vmatpush2.msra.mxu0 0.0
    %179 = vmatprep.subr.mxu0 0.0
    %180 = vmatpush2.msra.mxu0 0.0
    %181 = vmatprep.subr.mxu0 0.0
    %182 = vmatpush2.msra.mxu0 0.0
    %183 = vmatprep.subr.mxu0 0.0
    %184 = vmatpush2.msra.mxu0 0.0
    %185 = vmatprep.subr.mxu0 0.0
    %186 = vmatpush2.msra.mxu0 0.0
    %187 = vmatprep.subr.mxu0 0.0
    %188 = vmatpush2.msra.mxu0 0.0
    %189 = vmatprep.subr.mxu0 0.0
    %190 = vmatpush2.msra.mxu0 0.0
    %191 = vmatprep.subr.mxu0 0.0
    %192 = vmatpush2.msra.mxu0 0.0
    %193 = vmatprep.subr.mxu0 0.0
    %194 = vmatpush2.msra.mxu0 0.0
    %195 = vmatprep.subr.mxu0 0.0
    %196 = vmatpush2.msra.mxu0 0.0
    %197 = vmatprep.subr.mxu0 0.0
    %198 = vmatpush2.msra.mxu0 0.0
    %199 = vmatprep.subr.mxu0 0.0
    %200 = vmatpush2.msra.mxu0 0.0
    %201 = vmatprep.subr.mxu0 0.0
    %202 = vmatpush2.msra.mxu0 0.0
    %203 = vmatprep.subr.mxu0 0.0
    %204 = vmatpush2.msra.mxu0 0.0
    %205 = vmatprep.mubr.f32.mxu0 0.0
    %206 = vmatmul.mubr.f32.gmra.mxu0 %v136
    %v207 = vpop.f32.mrf.mxu0
    %v208 = vadd.f32 %v140, %v207
    %v209 = vpop.f32.mrf.mxu0
    %210 = vdwg.mxu0
    %vm211 = vcmask 89088
    %212 = vst.msk [vmem:[#allocation7] sm:$0xff] %vm211, %v208
    // Predicated region
    $region18: #{tpu_custom_call.1} parent=1 // pred_check
      _
    $region19: #{tpu_custom_call.1} parent=1 // pred_check_branch
      %214 = sbr.rel (0) target = $region21
    $region20: #{tpu_custom_call.1} parent=1 // pred_region
      %s216 = ssub.s32 128, 128
      %217 = vsyncadd [#allocation4], %s216
      %s219 = sshll.u32 [#allocation7], 4
      %s220 = int_to_ptr.vmem [resolvable:$true] %s219
      %222 = dma.vmem_to_hbm [thread:$0]  %s220, 128, %s2, [#allocation4]
    $region21: #{tpu_custom_call.1} parent=1 // pred_fallthru
      _
    // Predicated region
    $region22: #{tpu_custom_call.1} parent=1 // pred_check
      _
    $region23: #{tpu_custom_call.1} parent=1 // pred_check_branch
      %224 = sbr.rel (0) target = $region25
    $region24: #{tpu_custom_call.1} parent=1 // pred_region
      %225 = dma.done [#allocation4], 128
    $region25: #{tpu_custom_call.1} parent=1 // pred_fallthru
      _
    %226 = vsyncpa [#allocation3], 1
    %227 = vsyncpa [#allocation6], 1
    %228 = vsyncpa [#allocation4], 1

</llo_original>
